<compile_context>
chip_gen: v7x
topology: tpu7x:2x2x1
jax: 0.10.0
libtpu: 0.0.40
codegen_flags: <defaults>
</compile_context>

<pallas_src>
import functools

import jax
import jax.numpy as jnp
from jax import lax
from jax.experimental import pallas as pl
from jax.experimental.pallas import tpu as pltpu


def _parallel_conv_kernel(x_ref, w_ref, b_ref, o_ref, xpad_ref, *, W, PAD):
    """Fused 3x3 (+ folded 1x1) conv for one image, NC(HW) layout.

    x_ref:    (1, C, H*W)            flattened NCHW input image
    w_ref:    (9, C, C)              fused weights, [kh*3+kw, cout, cin]
    b_ref:    (C, 1)                 fused bias (b3 + b1)
    o_ref:    (1, C, H*W)            output
    xpad_ref: (C, PAD + H*W + PAD)   f32 VMEM scratch with zero margins
    """
    C = o_ref.shape[1]
    HW = o_ref.shape[2]

    # Load the image once; reused both for the padded copy and the center tap.
    xv = x_ref[0]                                     # (C, HW) f32

    # In-kernel "zero padding": copy the image into a flat buffer with PAD
    # zero lanes on each side (PAD >= W+1, rounded up to 128 so the data
    # store stays lane-aligned and unmasked).
    zeros_margin = jnp.zeros((C, PAD), dtype=xpad_ref.dtype)
    xpad_ref[:, 0:PAD] = zeros_margin
    xpad_ref[:, PAD + HW:PAD + HW + PAD] = zeros_margin
    xpad_ref[:, PAD:PAD + HW] = xv.astype(xpad_ref.dtype)

    # Column-validity masks for the horizontally shifted taps (the only place
    # where a flat shift differs from true 2-D zero padding).
    col = lax.broadcasted_iota(jnp.int32, (C, HW), 1) % W
    ok_left = col > 0          # tap with dw == -1 is invalid at w == 0
    ok_right = col < (W - 1)   # tap with dw == +1 is invalid at w == W-1

    # Accumulator starts from the fused bias of both parallel branches
    # (broadcast along lanes) -> no separate bias add at the end.
    acc = jnp.broadcast_to(b_ref[...], (C, HW)).astype(jnp.float32)

    tap = 0
    for dh in (-1, 0, 1):
        for dw in (-1, 0, 1):
            if dh == 0 and dw == 0:
                shifted = xv.astype(jnp.float32)       # center tap: no shift
            else:
                start = PAD + dh * W + dw
                shifted = xpad_ref[:, start:start + HW]
                if dw == -1:
                    shifted = jnp.where(ok_left, shifted, 0.0)
                elif dw == 1:
                    shifted = jnp.where(ok_right, shifted, 0.0)
            # (Cout, Cin) @ (Cin, HW) -> (Cout, HW); HW is the lane axis.
            acc = acc + jnp.dot(w_ref[tap], shifted,
                                preferred_element_type=jnp.float32)
            tap += 1

    o_ref[0] = acc.astype(o_ref.dtype)


def parallel_forward(x_nchw, w3, b3, w1, b1):
    """x_nchw: (N, C, H, W) float32.  Returns (N, C, H, W) float32."""
    N, C, H, W = x_nchw.shape
    HW = H * W
    PAD = ((W + 1 + 127) // 128) * 128   # >= W+1 and lane-aligned

    # Algebraic fusion of the Parallel combinator: conv3x3(x)+b3 + conv1x1(x)+b1
    # == conv3x3 with the 1x1 weights added to the center tap and biases summed.
    w_fused = w3.at[:, :, 1, 1].add(w1[:, :, 0, 0])          # (Cout, Cin, 3, 3)
    b_fused = (b3 + b1).reshape(C, 1).astype(jnp.float32)    # (Cout, 1)
    # Layout for the kernel: tap-major (kh*3+kw, Cout, Cin).
    w_k = jnp.transpose(w_fused, (2, 3, 0, 1)).reshape(9, C, C)

    # Free reshape (row-major contiguous): NCHW -> (N, C, H*W).
    x_flat = x_nchw.reshape(N, C, HW)

    kernel = functools.partial(_parallel_conv_kernel, W=W, PAD=PAD)

    cost = pl.CostEstimate(
        flops=2 * N * 9 * C * C * HW,
        transcendentals=0,
        bytes_accessed=(2 * N * C * HW + 9 * C * C + C) * 4,
    )

    out_flat = pl.pallas_call(
        kernel,
        out_shape=jax.ShapeDtypeStruct((N, C, HW), jnp.float32),
        grid_spec=pltpu.PrefetchScalarGridSpec(
            num_scalar_prefetch=0,
            grid=(N,),
            in_specs=[
                pl.BlockSpec((1, C, HW), lambda n: (n, 0, 0)),   # image
                pl.BlockSpec((9, C, C), lambda n: (0, 0, 0)),    # fused weights
                pl.BlockSpec((C, 1), lambda n: (0, 0)),          # fused bias
            ],
            out_specs=pl.BlockSpec((1, C, HW), lambda n: (n, 0, 0)),
            scratch_shapes=[
                pltpu.VMEM((C, PAD + HW + PAD), jnp.float32),
            ],
        ),
        compiler_params=pltpu.CompilerParams(
            dimension_semantics=("parallel",)),
        cost_estimate=cost,
    )(x_flat, w_k, b_fused)

    # Free reshape back to NCHW.
    return out_flat.reshape(N, C, H, W)


def _reference_forward(x_nchw, w3, b3, w1, b1):
    """Pure-JAX reference: conv3x3(x) + conv1x1(x), NCHW."""
    dn = lax.conv_dimension_numbers(x_nchw.shape, w3.shape,
                                    ("NCHW", "OIHW", "NCHW"))
    y1 = lax.conv_general_dilated(x_nchw, w3, window_strides=(1, 1),
                                  padding=((1, 1), (1, 1)),
                                  dimension_numbers=dn)
    y1 = y1 + b3.reshape(1, -1, 1, 1)
    y2 = lax.conv_general_dilated(x_nchw, w1, window_strides=(1, 1),
                                  padding=((0, 0), (0, 0)),
                                  dimension_numbers=dn)
    y2 = y2 + b1.reshape(1, -1, 1, 1)
    return y1 + y2


if __name__ == "__main__":
    key = jax.random.PRNGKey(0)
    N, C, H, W = 2, 4, 16, 16

    k_x, k_w3, k_b3, k_w1, k_b1 = jax.random.split(key, 5)
    x = jax.random.normal(k_x, (N, C, H, W), dtype=jnp.float32)

    # Deterministic parameter init (fan-in scaled normals + small biases).
    w3 = jax.random.normal(k_w3, (C, C, 3, 3), dtype=jnp.float32) * (1.0 / (C * 9) ** 0.5)
    b3 = jax.random.normal(k_b3, (C,), dtype=jnp.float32) * 0.1
    w1 = jax.random.normal(k_w1, (C, C, 1, 1), dtype=jnp.float32) * (1.0 / C ** 0.5)
    b1 = jax.random.normal(k_b1, (C,), dtype=jnp.float32) * 0.1

    out = parallel_forward(x, w3, b3, w1, b1)
    out = jax.block_until_ready(out)

    ref = _reference_forward(x, w3, b3, w1, b1)
    assert out.shape == (N, C, H, W)
    assert jnp.allclose(out, ref, atol=1e-4, rtol=1e-4), "mismatch vs reference"

    print("KERNEL_OK")
</pallas_src>

<mosaic_0001>
module attributes {stable_mosaic.version = 11 : i64} {
  func.func @_parallel_conv_kernel(%arg0: i32, %arg1: memref<1x4x256xf32, #tpu.memory_space<vmem>>, %arg2: memref<9x4x4xf32, #tpu.memory_space<vmem>>, %arg3: memref<4x1xf32, #tpu.memory_space<vmem>>, %arg4: memref<1x4x256xf32, #tpu.memory_space<vmem>>, %arg5: memref<4x512xf32, #tpu.memory_space<vmem>>) attributes {dimension_semantics = [#tpu.dimension_semantics<parallel>], iteration_bounds = array<i64: 2>, scalar_prefetch = 0 : i64, scratch_operands = 1 : i64, tpu.core_type = #tpu.core_type<tc>, window_params = [{transform_indices = @transform_0, window_bounds = array<i64: 1, 4, 256>}, {pipeline_mode = #tpu.pipeline_mode<synchronous>, transform_indices = @transform_1, window_bounds = array<i64: 9, 4, 4>}, {pipeline_mode = #tpu.pipeline_mode<synchronous>, transform_indices = @transform_2, window_bounds = array<i64: 4, 1>}, {transform_indices = @transform_3, window_bounds = array<i64: 1, 4, 256>}]} {
    %c0 = arith.constant 0 : index
    %c0_0 = arith.constant 0 : index
    %c0_1 = arith.constant 0 : index
    %0 = vector.load %arg1[%c0, %c0_0, %c0_1] : memref<1x4x256xf32, #tpu.memory_space<vmem>>, vector<1x4x256xf32>
    %1 = vector.shape_cast %0 : vector<1x4x256xf32> to vector<4x256xf32>
    %cst = arith.constant 0.000000e+00 : f32
    %2 = vector.broadcast %cst : f32 to vector<4x128xf32>
    %c0_2 = arith.constant 0 : index
    %c0_3 = arith.constant 0 : index
    %3 = vector.load %arg5[%c0_2, %c0_3] : memref<4x512xf32, #tpu.memory_space<vmem>>, vector<4x128xf32>
    tpu.vector_store %arg5[%c0_2, %c0_3], %2 {strides = array<i32>} : memref<4x512xf32, #tpu.memory_space<vmem>>, vector<4x128xf32>,
    %c0_4 = arith.constant 0 : index
    %c384 = arith.constant 384 : index
    %4 = vector.load %arg5[%c0_4, %c384] : memref<4x512xf32, #tpu.memory_space<vmem>>, vector<4x128xf32>
    tpu.vector_store %arg5[%c0_4, %c384], %2 {strides = array<i32>} : memref<4x512xf32, #tpu.memory_space<vmem>>, vector<4x128xf32>,
    %c0_5 = arith.constant 0 : index
    %c128 = arith.constant 128 : index
    %5 = vector.load %arg5[%c0_5, %c128] : memref<4x512xf32, #tpu.memory_space<vmem>>, vector<4x256xf32>
    tpu.vector_store %arg5[%c0_5, %c128], %1 {strides = array<i32>} : memref<4x512xf32, #tpu.memory_space<vmem>>, vector<4x256xf32>,
    %6 = tpu.iota {dimensions = array<i32: 1>} : vector<4x256xi32>
    %c16_i32 = arith.constant 16 : i32
    %c0_i32 = arith.constant 0 : i32
    %7 = arith.cmpi eq, %c16_i32, %c0_i32 : i32
    %c1_i32 = arith.constant 1 : i32
    %8 = arith.select %7, %c1_i32, %c16_i32 : i32
    %9 = vector.broadcast %8 : i32 to vector<4x256xi32>
    %10 = arith.remsi %6, %9 : vector<4x256xi32>
    %c0_i32_6 = arith.constant 0 : i32
    %11 = vector.broadcast %c0_i32_6 : i32 to vector<4x256xi32>
    %12 = arith.cmpi ne, %10, %11 : vector<4x256xi32>
    %c0_i32_7 = arith.constant 0 : i32
    %13 = vector.broadcast %c0_i32_7 : i32 to vector<4x256xi32>
    %14 = arith.cmpi slt, %10, %13 : vector<4x256xi32>
    %c0_i32_8 = arith.constant 0 : i32
    %15 = arith.cmpi slt, %8, %c0_i32_8 : i32
    %16 = vector.broadcast %15 : i1 to vector<4x256xi1>
    %17 = vector.broadcast %16 : vector<4x256xi1> to vector<4x256xi1>
    %18 = arith.xori %14, %17 : vector<4x256xi1>
    %19 = arith.andi %18, %12 : vector<4x256xi1>
    %20 = vector.broadcast %8 : i32 to vector<4x256xi32>
    %21 = arith.addi %10, %20 : vector<4x256xi32>
    %22 = arith.select %19, %21, %10 : vector<4x256xi1>, vector<4x256xi32>
    %c0_i32_9 = arith.constant 0 : i32
    %23 = vector.broadcast %c0_i32_9 : i32 to vector<4x256xi32>
    %24 = arith.cmpi sgt, %22, %23 : vector<4x256xi32>
    %c15_i32 = arith.constant 15 : i32
    %25 = vector.broadcast %c15_i32 : i32 to vector<4x256xi32>
    %26 = arith.cmpi slt, %22, %25 : vector<4x256xi32>
    %c0_10 = arith.constant 0 : index
    %c0_11 = arith.constant 0 : index
    %27 = vector.load %arg3[%c0_10, %c0_11] : memref<4x1xf32, #tpu.memory_space<vmem>>, vector<4x1xf32>
    %28 = vector.shape_cast %27 : vector<4x1xf32> to vector<4x1xf32>
    %29 = vector.broadcast %28 : vector<4x1xf32> to vector<4x256xf32>
    %c0_12 = arith.constant 0 : index
    %c111 = arith.constant 111 : index
    %30 = vector.load %arg5[%c0_12, %c111] : memref<4x512xf32, #tpu.memory_space<vmem>>, vector<4x256xf32>
    %cst_13 = arith.constant 0.000000e+00 : f32
    %31 = vector.broadcast %cst_13 : f32 to vector<4x256xf32>
    %32 = arith.select %24, %30, %31 : vector<4x256xi1>, vector<4x256xf32>
    %c0_14 = arith.constant 0 : index
    %c0_15 = arith.constant 0 : index
    %c0_16 = arith.constant 0 : index
    %33 = vector.load %arg2[%c0_14, %c0_15, %c0_16] : memref<9x4x4xf32, #tpu.memory_space<vmem>>, vector<1x4x4xf32>
    %34 = vector.shape_cast %33 : vector<1x4x4xf32> to vector<4x4xf32>
    %cst_17 = arith.constant dense<0.000000e+00> : vector<4x256xf32>
    %35 = tpu.matmul %34, %32, %cst_17 {dimension_numbers = #tpu.dot_dimension_numbers<[1], [0], [0], [1], [0, 0, 1, 1], [], []>} : vector<4x4xf32>, vector<4x256xf32>, vector<4x256xf32> -> vector<4x256xf32>
    %36 = arith.addf %29, %35 : vector<4x256xf32>
    %c0_18 = arith.constant 0 : index
    %c112 = arith.constant 112 : index
    %37 = vector.load %arg5[%c0_18, %c112] : memref<4x512xf32, #tpu.memory_space<vmem>>, vector<4x256xf32>
    %c1 = arith.constant 1 : index
    %c0_19 = arith.constant 0 : index
    %c0_20 = arith.constant 0 : index
    %38 = vector.load %arg2[%c1, %c0_19, %c0_20] : memref<9x4x4xf32, #tpu.memory_space<vmem>>, vector<1x4x4xf32>
    %39 = vector.shape_cast %38 : vector<1x4x4xf32> to vector<4x4xf32>
    %cst_21 = arith.constant dense<0.000000e+00> : vector<4x256xf32>
    %40 = tpu.matmul %39, %37, %cst_21 {dimension_numbers = #tpu.dot_dimension_numbers<[1], [0], [0], [1], [0, 0, 1, 1], [], []>} : vector<4x4xf32>, vector<4x256xf32>, vector<4x256xf32> -> vector<4x256xf32>
    %41 = arith.addf %36, %40 : vector<4x256xf32>
    %c0_22 = arith.constant 0 : index
    %c113 = arith.constant 113 : index
    %42 = vector.load %arg5[%c0_22, %c113] : memref<4x512xf32, #tpu.memory_space<vmem>>, vector<4x256xf32>
    %cst_23 = arith.constant 0.000000e+00 : f32
    %43 = vector.broadcast %cst_23 : f32 to vector<4x256xf32>
    %44 = arith.select %26, %42, %43 : vector<4x256xi1>, vector<4x256xf32>
    %c2 = arith.constant 2 : index
    %c0_24 = arith.constant 0 : index
    %c0_25 = arith.constant 0 : index
    %45 = vector.load %arg2[%c2, %c0_24, %c0_25] : memref<9x4x4xf32, #tpu.memory_space<vmem>>, vector<1x4x4xf32>
    %46 = vector.shape_cast %45 : vector<1x4x4xf32> to vector<4x4xf32>
    %cst_26 = arith.constant dense<0.000000e+00> : vector<4x256xf32>
    %47 = tpu.matmul %46, %44, %cst_26 {dimension_numbers = #tpu.dot_dimension_numbers<[1], [0], [0], [1], [0, 0, 1, 1], [], []>} : vector<4x4xf32>, vector<4x256xf32>, vector<4x256xf32> -> vector<4x256xf32>
    %48 = arith.addf %41, %47 : vector<4x256xf32>
    %c0_27 = arith.constant 0 : index
    %c127 = arith.constant 127 : index
    %49 = vector.load %arg5[%c0_27, %c127] : memref<4x512xf32, #tpu.memory_space<vmem>>, vector<4x256xf32>
    %cst_28 = arith.constant 0.000000e+00 : f32
    %50 = vector.broadcast %cst_28 : f32 to vector<4x256xf32>
    %51 = arith.select %24, %49, %50 : vector<4x256xi1>, vector<4x256xf32>
    %c3 = arith.constant 3 : index
    %c0_29 = arith.constant 0 : index
    %c0_30 = arith.constant 0 : index
    %52 = vector.load %arg2[%c3, %c0_29, %c0_30] : memref<9x4x4xf32, #tpu.memory_space<vmem>>, vector<1x4x4xf32>
    %53 = vector.shape_cast %52 : vector<1x4x4xf32> to vector<4x4xf32>
    %cst_31 = arith.constant dense<0.000000e+00> : vector<4x256xf32>
    %54 = tpu.matmul %53, %51, %cst_31 {dimension_numbers = #tpu.dot_dimension_numbers<[1], [0], [0], [1], [0, 0, 1, 1], [], []>} : vector<4x4xf32>, vector<4x256xf32>, vector<4x256xf32> -> vector<4x256xf32>
    %55 = arith.addf %48, %54 : vector<4x256xf32>
    %c4 = arith.constant 4 : index
    %c0_32 = arith.constant 0 : index
    %c0_33 = arith.constant 0 : index
    %56 = vector.load %arg2[%c4, %c0_32, %c0_33] : memref<9x4x4xf32, #tpu.memory_space<vmem>>, vector<1x4x4xf32>
    %57 = vector.shape_cast %56 : vector<1x4x4xf32> to vector<4x4xf32>
    %cst_34 = arith.constant dense<0.000000e+00> : vector<4x256xf32>
    %58 = tpu.matmul %57, %1, %cst_34 {dimension_numbers = #tpu.dot_dimension_numbers<[1], [0], [0], [1], [0, 0, 1, 1], [], []>} : vector<4x4xf32>, vector<4x256xf32>, vector<4x256xf32> -> vector<4x256xf32>
    %59 = arith.addf %55, %58 : vector<4x256xf32>
    %c0_35 = arith.constant 0 : index
    %c129 = arith.constant 129 : index
    %60 = vector.load %arg5[%c0_35, %c129] : memref<4x512xf32, #tpu.memory_space<vmem>>, vector<4x256xf32>
    %cst_36 = arith.constant 0.000000e+00 : f32
    %61 = vector.broadcast %cst_36 : f32 to vector<4x256xf32>
    %62 = arith.select %26, %60, %61 : vector<4x256xi1>, vector<4x256xf32>
    %c5 = arith.constant 5 : index
    %c0_37 = arith.constant 0 : index
    %c0_38 = arith.constant 0 : index
    %63 = vector.load %arg2[%c5, %c0_37, %c0_38] : memref<9x4x4xf32, #tpu.memory_space<vmem>>, vector<1x4x4xf32>
    %64 = vector.shape_cast %63 : vector<1x4x4xf32> to vector<4x4xf32>
    %cst_39 = arith.constant dense<0.000000e+00> : vector<4x256xf32>
    %65 = tpu.matmul %64, %62, %cst_39 {dimension_numbers = #tpu.dot_dimension_numbers<[1], [0], [0], [1], [0, 0, 1, 1], [], []>} : vector<4x4xf32>, vector<4x256xf32>, vector<4x256xf32> -> vector<4x256xf32>
    %66 = arith.addf %59, %65 : vector<4x256xf32>
    %c0_40 = arith.constant 0 : index
    %c143 = arith.constant 143 : index
    %67 = vector.load %arg5[%c0_40, %c143] : memref<4x512xf32, #tpu.memory_space<vmem>>, vector<4x256xf32>
    %cst_41 = arith.constant 0.000000e+00 : f32
    %68 = vector.broadcast %cst_41 : f32 to vector<4x256xf32>
    %69 = arith.select %24, %67, %68 : vector<4x256xi1>, vector<4x256xf32>
    %c6 = arith.constant 6 : index
    %c0_42 = arith.constant 0 : index
    %c0_43 = arith.constant 0 : index
    %70 = vector.load %arg2[%c6, %c0_42, %c0_43] : memref<9x4x4xf32, #tpu.memory_space<vmem>>, vector<1x4x4xf32>
    %71 = vector.shape_cast %70 : vector<1x4x4xf32> to vector<4x4xf32>
    %cst_44 = arith.constant dense<0.000000e+00> : vector<4x256xf32>
    %72 = tpu.matmul %71, %69, %cst_44 {dimension_numbers = #tpu.dot_dimension_numbers<[1], [0], [0], [1], [0, 0, 1, 1], [], []>} : vector<4x4xf32>, vector<4x256xf32>, vector<4x256xf32> -> vector<4x256xf32>
    %73 = arith.addf %66, %72 : vector<4x256xf32>
    %c0_45 = arith.constant 0 : index
    %c144 = arith.constant 144 : index
    %74 = vector.load %arg5[%c0_45, %c144] : memref<4x512xf32, #tpu.memory_space<vmem>>, vector<4x256xf32>
    %c7 = arith.constant 7 : index
    %c0_46 = arith.constant 0 : index
    %c0_47 = arith.constant 0 : index
    %75 = vector.load %arg2[%c7, %c0_46, %c0_47] : memref<9x4x4xf32, #tpu.memory_space<vmem>>, vector<1x4x4xf32>
    %76 = vector.shape_cast %75 : vector<1x4x4xf32> to vector<4x4xf32>
    %cst_48 = arith.constant dense<0.000000e+00> : vector<4x256xf32>
    %77 = tpu.matmul %76, %74, %cst_48 {dimension_numbers = #tpu.dot_dimension_numbers<[1], [0], [0], [1], [0, 0, 1, 1], [], []>} : vector<4x4xf32>, vector<4x256xf32>, vector<4x256xf32> -> vector<4x256xf32>
    %78 = arith.addf %73, %77 : vector<4x256xf32>
    %c0_49 = arith.constant 0 : index
    %c145 = arith.constant 145 : index
    %79 = vector.load %arg5[%c0_49, %c145] : memref<4x512xf32, #tpu.memory_space<vmem>>, vector<4x256xf32>
    %cst_50 = arith.constant 0.000000e+00 : f32
    %80 = vector.broadcast %cst_50 : f32 to vector<4x256xf32>
    %81 = arith.select %26, %79, %80 : vector<4x256xi1>, vector<4x256xf32>
    %c8 = arith.constant 8 : index
    %c0_51 = arith.constant 0 : index
    %c0_52 = arith.constant 0 : index
    %82 = vector.load %arg2[%c8, %c0_51, %c0_52] : memref<9x4x4xf32, #tpu.memory_space<vmem>>, vector<1x4x4xf32>
    %83 = vector.shape_cast %82 : vector<1x4x4xf32> to vector<4x4xf32>
    %cst_53 = arith.constant dense<0.000000e+00> : vector<4x256xf32>
    %84 = tpu.matmul %83, %81, %cst_53 {dimension_numbers = #tpu.dot_dimension_numbers<[1], [0], [0], [1], [0, 0, 1, 1], [], []>} : vector<4x4xf32>, vector<4x256xf32>, vector<4x256xf32> -> vector<4x256xf32>
    %85 = arith.addf %78, %84 : vector<4x256xf32>
    %c0_54 = arith.constant 0 : index
    %c0_55 = arith.constant 0 : index
    %c0_56 = arith.constant 0 : index
    %86 = vector.load %arg4[%c0_54, %c0_55, %c0_56] : memref<1x4x256xf32, #tpu.memory_space<vmem>>, vector<1x4x256xf32>
    %87 = vector.shape_cast %86 : vector<1x4x256xf32> to vector<4x256xf32>
    %88 = vector.shape_cast %85 : vector<4x256xf32> to vector<1x4x256xf32>
    tpu.vector_store %arg4[%c0_54, %c0_55, %c0_56], %88 {strides = array<i32>} : memref<1x4x256xf32, #tpu.memory_space<vmem>>, vector<1x4x256xf32>,
    return
  }
  func.func @transform_0(%arg0: i32) -> (i32, i32, i32) {
    %c0_i32 = arith.constant 0 : i32
    %c0_i32_0 = arith.constant 0 : i32
    %c0_i32_1 = arith.constant 0 : i32
    return %arg0, %c0_i32, %c0_i32_0 : i32, i32, i32
  }
  func.func @transform_1(%arg0: i32) -> (i32, i32, i32) {
    %c0_i32 = arith.constant 0 : i32
    %c0_i32_0 = arith.constant 0 : i32
    %c0_i32_1 = arith.constant 0 : i32
    %c0_i32_2 = arith.constant 0 : i32
    return %c0_i32, %c0_i32_0, %c0_i32_1 : i32, i32, i32
  }
  func.func @transform_2(%arg0: i32) -> (i32, i32) {
    %c0_i32 = arith.constant 0 : i32
    %c0_i32_0 = arith.constant 0 : i32
    %c0_i32_1 = arith.constant 0 : i32
    return %c0_i32, %c0_i32_0 : i32, i32
  }
  func.func @transform_3(%arg0: i32) -> (i32, i32, i32) {
    %c0_i32 = arith.constant 0 : i32
    %c0_i32_0 = arith.constant 0 : i32
    %c0_i32_1 = arith.constant 0 : i32
    return %arg0, %c0_i32, %c0_i32_0 : i32, i32, i32
  }
}

</mosaic_0001>

<llo_original>
// kernel: tpu_custom_call.1
$region0: #{tpu_custom_call.1}
  #allocation0 [shape = 'u32[]', space=smem, size = 0x4, offset = 0x4, fixed_abs, tag = 'smem constant byte address 0x4 - core index']
  #allocation1 [shape = 'u32[144,128]{1,0:T(1,128)}', space=vmem, size = 0x12000, scoped, tag = 'internal scratch']
  #allocation2 [shape = 'f32[4,512]{1,0:T(4,128)}', space=vmem, size = 0x2000, scoped, tag = 'scratch operand']
  %s0 = inlined_call_operand.vmem [shape: f32[2,4,256], index: 0, kind: input, shape index: {}]
  %s1 = inlined_call_operand.vmem [shape: f32[9,4,4], index: 1, kind: input, shape index: {}]
  %s2 = inlined_call_operand.vmem [shape: f32[4,1], index: 2, kind: input, shape index: {}]
  %s3 = inlined_call_operand.hbm [shape: f32[2,4,256], index: 3, kind: output, shape index: {}]
  %s4 = sld [smem:[#allocation0]]
  $region45: #{tpu_custom_call.1} parent=0
    _
  %s6 = ssub.s32 1, %s4
  %s7 = scalar_select 0, %s6, %s4
  $region1: #{tpu_custom_call.1} parent=0
    #allocation3 [shape = 'u8[8192]{0}', space=vmem, size = 0x2000, scoped, tag = 'output window, operand 0']
    #allocation4 [shape = 's32[2]{0}', space=sflag, size = 0x8, scoped, tag = 'scoped memory for tpu_custom_call.1']
    %8 = vsyncpa [#allocation4], 0
    %s9 = scalar_lea.sflag [#allocation4], 1
    %10 = vsyncpa %s9, 0
    loop: start=0, step=1, limit=4
    $region2: #{tpu_custom_call.1} parent=1 // loop_pre_header
      _
    $region3: #{tpu_custom_call.1} parent=1 // loop_header
      %s12 = sphi 0, %s16
      %p13 = scmp.ge.s32.totalorder %s12, 4
      %s22 = sphi 0, %s24
      %s25 = sphi 0, %s22
      %s26 = sphi 0, %s25
      %s42 = sphi 0, %s26
      %s46 = sphi 0, %s46
      %s48 = sphi 0, %s46
      %s49 = sphi 0, %s48
      %s63 = sphi 0, %s49
      %s67 = sphi 0, %s67
      %s69 = sphi 0, %s67
      %s70 = sphi 0, %s69
      %s84 = sphi 0, %s70
      %s90 = sphi 0, %s92
      %s93 = sphi 0, %s90
      %s94 = sphi 0, %s93
      %s110 = sphi 0, %s94
    $region4: #{tpu_custom_call.1} parent=1 // loop_header_branch
      %15 = sbr.rel (%p13) target = $region8
    $region5: #{tpu_custom_call.1} parent=1 // loop_body
      %s17 = ssub.s32 %s12, 1
      %s18 = ssub.s32 %s12, 2
      %s19 = sadd.s32 %s12, 1
      %s20 = ssub.s32 %s12, %s19
      %p21 = scmp.eq.s32.totalorder %s20, 0
      %s23 = sadd.s32 %s22, 1
      %s24 = scalar_select %p21, %s22, %s23
      %p27 = pneg %p21
      %p28 = scmp.eq.s32.totalorder %s12, 1
      %p29 = por %p27, %p28
      %p30 = scmp.ne.s32.totalorder %s22, %s25
      %p31 = scmp.eq.s32.totalorder %s12, 0
      %p32 = por %p30, %p31
      %p33 = scmp.ne.s32.totalorder %s22, %s25
      %p34 = scmp.eq.s32.totalorder %s17, 1
      %p35 = por %p33, %p34
      %p36 = scmp.ne.s32.totalorder %s25, %s26
      %p37 = scmp.eq.s32.totalorder %s17, 0
      %p38 = por %p36, %p37
      %p39 = scmp.ne.s32.totalorder %s25, %s26
      %p40 = scmp.eq.s32.totalorder %s18, 1
      %p41 = por %p39, %p40
      %p43 = scmp.ne.s32.totalorder %s26, %s42
      %p44 = scmp.eq.s32.totalorder %s18, 0
      %p45 = por %p43, %p44
      %s47 = sadd.s32 %s46, 1
      %p50 = scmp.eq.s32.totalorder %s12, 1
      %p51 = scmp.ne.s32.totalorder %s46, %s48
      %p52 = scmp.eq.s32.totalorder %s12, 0
      %p53 = por %p51, %p52
      %p54 = scmp.ne.s32.totalorder %s46, %s48
      %p55 = scmp.eq.s32.totalorder %s17, 1
      %p56 = por %p54, %p55
      %p57 = scmp.ne.s32.totalorder %s48, %s49
      %p58 = scmp.eq.s32.totalorder %s17, 0
      %p59 = por %p57, %p58
      %p60 = scmp.ne.s32.totalorder %s48, %s49
      %p61 = scmp.eq.s32.totalorder %s18, 1
      %p62 = por %p60, %p61
      %p64 = scmp.ne.s32.totalorder %s49, %s63
      %p65 = scmp.eq.s32.totalorder %s18, 0
      %p66 = por %p64, %p65
      %s68 = sadd.s32 %s67, 1
      %p71 = scmp.eq.s32.totalorder %s12, 1
      %p72 = scmp.ne.s32.totalorder %s67, %s69
      %p73 = scmp.eq.s32.totalorder %s12, 0
      %p74 = por %p72, %p73
      %p75 = scmp.ne.s32.totalorder %s67, %s69
      %p76 = scmp.eq.s32.totalorder %s17, 1
      %p77 = por %p75, %p76
      %p78 = scmp.ne.s32.totalorder %s69, %s70
      %p79 = scmp.eq.s32.totalorder %s17, 0
      %p80 = por %p78, %p79
      %p81 = scmp.ne.s32.totalorder %s69, %s70
      %p82 = scmp.eq.s32.totalorder %s18, 1
      %p83 = por %p81, %p82
      %p85 = scmp.ne.s32.totalorder %s70, %s84
      %p86 = scmp.eq.s32.totalorder %s18, 0
      %p87 = por %p85, %p86
      %s88 = ssub.s32 %s12, %s19
      %p89 = scmp.eq.s32.totalorder %s88, 0
      %s91 = sadd.s32 %s90, 1
      %s92 = scalar_select %p89, %s90, %s91
      %p95 = pneg %p89
      %p96 = scmp.eq.s32.totalorder %s12, 1
      %p97 = por %p95, %p96
      %p98 = scmp.ne.s32.totalorder %s90, %s93
      %p99 = scmp.eq.s32.totalorder %s12, 0
      %p100 = por %p98, %p99
      %p101 = scmp.ne.s32.totalorder %s90, %s93
      %p102 = scmp.eq.s32.totalorder %s17, 1
      %p103 = por %p101, %p102
      %p104 = scmp.ne.s32.totalorder %s93, %s94
      %p105 = scmp.eq.s32.totalorder %s17, 0
      %p106 = por %p104, %p105
      %p107 = scmp.ne.s32.totalorder %s93, %s94
      %p108 = scmp.eq.s32.totalorder %s18, 1
      %p109 = por %p107, %p108
      %p111 = scmp.ne.s32.totalorder %s94, %s110
      %p112 = scmp.eq.s32.totalorder %s18, 0
      %p113 = por %p111, %p112
      %p114 = scmp.le.s32.totalorder 1, %s12
      %p115 = scmp.lt.s32.totalorder %s12, 3
      %p116 = pnand %p114, %p115
      %p117 = pneg %p116
      // Predicated region
      $region9: #{tpu_custom_call.1} parent=5 // pred_check
        _
      $region10: #{tpu_custom_call.1} parent=5 // pred_check_branch
        %119 = sbr.rel (%p116) target = $region12
      $region11: #{tpu_custom_call.1} parent=5 // pred_region
        %s120 = ssub.s32 %s12, 1
        // Predicated region
        $region13: #{tpu_custom_call.1} parent=11 // pred_check
          %p121 = pneg %p59
        $region14: #{tpu_custom_call.1} parent=11 // pred_check_branch
          %123 = sbr.rel (%p121) target = $region16
        $region15: #{tpu_custom_call.1} parent=11 // pred_region
          _
        $region16: #{tpu_custom_call.1} parent=11 // pred_fallthru
          _
        // Predicated region
        $region17: #{tpu_custom_call.1} parent=11 // pred_check
          %p124 = pneg %p80
        $region18: #{tpu_custom_call.1} parent=11 // pred_check_branch
          %126 = sbr.rel (%p124) target = $region20
        $region19: #{tpu_custom_call.1} parent=11 // pred_region
          _
        $region20: #{tpu_custom_call.1} parent=11 // pred_fallthru
          _
      $region12: #{tpu_custom_call.1} parent=5 // pred_fallthru
        _
      %p127 = scmp.lt.s32.totalorder %s12, 2
      // Predicated region
      $region21: #{tpu_custom_call.1} parent=5 // pred_check
        %p128 = pneg %p127
      $region22: #{tpu_custom_call.1} parent=5 // pred_check_branch
        %130 = sbr.rel (%p128) target = $region24
      $region23: #{tpu_custom_call.1} parent=5 // pred_region
        // Predicated region
        $region25: #{tpu_custom_call.1} parent=23 // pred_check
          %p131 = pneg %p32
        $region26: #{tpu_custom_call.1} parent=23 // pred_check_branch
          %133 = sbr.rel (%p131) target = $region28
        $region27: #{tpu_custom_call.1} parent=23 // pred_region
          %p134 = scmp.lt.s32.totalorder %s12, 1
          %s135 = scalar_select %p134, %s12, 1
          %s136 = smul.addr %s135, 2
          %s137 = smul.addr %s136, 4
          %s138 = scalar_lea.vmem %s0, %s137
        $region28: #{tpu_custom_call.1} parent=23 // pred_fallthru
          _
      $region24: #{tpu_custom_call.1} parent=5 // pred_fallthru
        _
      %p139 = scmp.le.s32.totalorder 1, %s12
      %p140 = scmp.lt.s32.totalorder %s12, 3
      %p141 = pnand %p139, %p140
      %p142 = pneg %p141
      // Predicated region
      $region29: #{tpu_custom_call.1} parent=5 // pred_check
        _
      $region30: #{tpu_custom_call.1} parent=5 // pred_check_branch
        %144 = sbr.rel (%p141) target = $region32
      $region31: #{tpu_custom_call.1} parent=5 // pred_region
        %s145 = ssub.s32 %s12, 1
        %p146 = scmp.lt.s32.totalorder %s17, 1
        %s147 = scalar_select %p146, %s17, 1
        %s148 = smul.addr %s147, 2
        %s149 = smul.addr %s148, 4
        %s150 = scalar_lea.vmem %s0, %s149
        %p151 = pneg %p38
        %p152 = pneg %p35
        %p153 = pneg %p59
        %p154 = pneg %p56
        %p155 = pneg %p80
        %p156 = pneg %p77
        %p157 = pneg %p106
        %p158 = pneg %p103
        %s159 = sand.u32 %s93, 1
        %s160 = scalar_lea.sflag [#allocation4], %s159
        %s161 = sand.u32 %s93, 1
        %s162 = smul.addr %s161, 8
        %s163 = scalar_lea.vmem [#allocation3], %s162
        %p164 = scmp.lt.s32.totalorder %s17, 1
        %s165 = scalar_select %p164, %s17, 1
        %s166 = smul.addr %s165, 2
        %s167 = smul.addr %s166, 4
        %s168 = scalar_lea.vmem %s0, %s167
        %v169 = vld [vmem:[%s168] sm:$0xff]
        %170 = vst [vmem:[#allocation2] sm:$0xf] 0.0
        %171 = vst [vmem:[#allocation2 + $0xc] sm:$0xf] 0.0
        %172 = vst [vmem:[#allocation2 + $0x4] sm:$0xff] %v169
        %v173 = vlaneseq
        %v174 = vand.u32 %v173, 127
        %v175 = vadd.s32 %v174, 128
        %vm176 = vcmp.lt.s32.totalorder %v174, 0
        %v177 = vsub.s32 0, %v174
        %v178 = vsel %vm176, %v177, %v174
        %v179 = vshrl.u32 %v178, 4
        %v180 = vand.u32 %v178, 15
        %v181 = vsub.s32 0, %v180
        %v182 = vsel %vm176, %v181, %v180
        %vm183 = vcmp.lt.s32.totalorder %v175, 0
        %v184 = vsub.s32 0, %v175
        %v185 = vsel %vm183, %v184, %v175
        %v186 = vshrl.u32 %v185, 4
        %v187 = vand.u32 %v185, 15
        %v188 = vsub.s32 0, %v187
        %v189 = vsel %vm183, %v188, %v187
        %vm190 = vcmp.ne.s32.totalorder %v182, 0
        %vm191 = vcmp.ne.s32.totalorder %v189, 0
        %vm192 = vcmp.lt.s32.totalorder %v182, 0
        %vm193 = vcmp.lt.s32.totalorder %v189, 0
        %vm194 = vmand %vm192, %vm190
        %vm195 = vmand %vm193, %vm191
        %v196 = vadd.s32 %v182, 16
        %v197 = vadd.s32 %v189, 16
        %v198 = vsel %vm194, %v196, %v182
        %v199 = vsel %vm195, %v197, %v189
        %vm200 = vcmp.gt.s32.totalorder %v198, 0
        %vm201 = vcmp.gt.s32.totalorder %v199, 0
        %vm202 = vcmp.lt.s32.totalorder %v198, 15
        %vm203 = vcmp.lt.s32.totalorder %v199, 15
        %v204 = vld [vmem:[%s2] sm:$0xf]
        %206 = vset.pattern.permute.xlu0 0
        %207 = vperm.xlu0 %206, %v204
        %v208 = vpop.permute.xlu0 %207
        %v210 = vld [vmem:[#allocation2] sm:$0xff]
        %v211 = vld [vmem:[#allocation2 + $0x8] sm:$0xf]
        %v214 = vcombine.high %v210, %v210
        %215 = vrot.lane.b32.xlu0 %v210, 17
        %v216 = vpop.permute.xlu0 %215
        %217 = vrot.lane.b32.xlu0 %v214, 17
        %v218 = vpop.permute.xlu0 %217
        %219 = vrot.lane.b32.xlu0 %v211, 17
        %v220 = vpop.permute.xlu0 %219
        %vm221 = vcmask 138240
        %v222 = vsel %vm221, %v216, %v218
        %v223 = vsel %vm221, %v218, %v220
        %v226 = vsel %vm200, %v222, 0.0
        %v227 = vsel %vm201, %v223, 0.0
        %v228 = vld [vmem:[%s1] sm:$0xf]
        %vm229 = vcmask 31744
        %v231 = vsel %vm229, %v228, 0
        %vm233 = vcmask 1043456
        %v235 = vsel %vm233, %v226, 0
        %v238 = vsel %vm233, %v227, 0
        %240 = vmatprep.subr.mxu0 %v238
        %241 = vmatpush1.msra.mxu0 %v235
        %242 = vmatprep.subr.mxu0 0.0
        %243 = vmatpush1.msra.mxu0 0.0
        %244 = vmatprep.subr.mxu0 0.0
        %245 = vmatpush1.msra.mxu0 0.0
        %246 = vmatprep.subr.mxu0 0.0
        %247 = vmatpush1.msra.mxu0 0.0
        %248 = vmatprep.subr.mxu0 0.0
        %249 = vmatpush1.msra.mxu0 0.0
        %250 = vmatprep.subr.mxu0 0.0
        %251 = vmatpush1.msra.mxu0 0.0
        %252 = vmatprep.subr.mxu0 0.0
        %253 = vmatpush1.msra.mxu0 0.0
        %254 = vmatprep.subr.mxu0 0.0
        %255 = vmatpush1.msra.mxu0 0.0
        %256 = vmatprep.subr.mxu0 0.0
        %257 = vmatpush1.msra.mxu0 0.0
        %258 = vmatprep.subr.mxu0 0.0
        %259 = vmatpush1.msra.mxu0 0.0
        %260 = vmatprep.subr.mxu0 0.0
        %261 = vmatpush1.msra.mxu0 0.0
        %262 = vmatprep.subr.mxu0 0.0
        %263 = vmatpush1.msra.mxu0 0.0
        %264 = vmatprep.subr.mxu0 0.0
        %265 = vmatpush1.msra.mxu0 0.0
        %266 = vmatprep.subr.mxu0 0.0
        %267 = vmatpush1.msra.mxu0 0.0
        %268 = vmatprep.subr.mxu0 0.0
        %269 = vmatpush1.msra.mxu0 0.0
        %270 = vmatprep.subr.mxu0 0.0
        %271 = vmatpush1.msra.mxu0 0.0
        %272 = vmatprep.subr.mxu0 0.0
        %273 = vmatpush1.msra.mxu0 0.0
        %274 = vmatprep.subr.mxu0 0.0
        %275 = vmatpush1.msra.mxu0 0.0
        %276 = vmatprep.subr.mxu0 0.0
        %277 = vmatpush1.msra.mxu0 0.0
        %278 = vmatprep.subr.mxu0 0.0
        %279 = vmatpush1.msra.mxu0 0.0
        %280 = vmatprep.subr.mxu0 0.0
        %281 = vmatpush1.msra.mxu0 0.0
        %282 = vmatprep.subr.mxu0 0.0
        %283 = vmatpush1.msra.mxu0 0.0
        %284 = vmatprep.subr.mxu0 0.0
        %285 = vmatpush1.msra.mxu0 0.0
        %286 = vmatprep.subr.mxu0 0.0
        %287 = vmatpush1.msra.mxu0 0.0
        %288 = vmatprep.subr.mxu0 0.0
        %289 = vmatpush1.msra.mxu0 0.0
        %290 = vmatprep.subr.mxu0 0.0
        %291 = vmatpush1.msra.mxu0 0.0
        %292 = vmatprep.subr.mxu0 0.0
        %293 = vmatpush1.msra.mxu0 0.0
        %294 = vmatprep.subr.mxu0 0.0
        %295 = vmatpush1.msra.mxu0 0.0
        %296 = vmatprep.subr.mxu0 0.0
        %297 = vmatpush1.msra.mxu0 0.0
        %298 = vmatprep.subr.mxu0 0.0
        %299 = vmatpush1.msra.mxu0 0.0
        %300 = vmatprep.subr.mxu0 0.0
        %301 = vmatpush1.msra.mxu0 0.0
        %302 = vmatprep.subr.mxu0 0.0
        %303 = vmatpush1.msra.mxu0 0.0
        %304 = vmatprep.mubr.f32.mxu0 0.0
        %305 = vmatmul.mubr.f32.gmra.mrb[0].mxu0 %v231
        %v306 = vpop.f32.mrb[0].mxu0
        %v307 = vadd.f32 0.0, %v306
        %v308 = vpop.f32.mrb[0].mxu0
        %v309 = vadd.f32 0.0, %v308
        %310 = vdwg.mxu0
        %v311 = vadd.f32 %v208, %v307
        %v312 = vadd.f32 %v208, %v309
        %v313 = vld [vmem:[#allocation2] sm:$0xff]
        %v314 = vld [vmem:[#allocation2 + $0x8] sm:$0xf]
        %s315 = scalar_lea.vmem %s1, 4
        %v316 = vld [vmem:[%s315] sm:$0xf]
        %v319 = vcombine.high %v313, %v313
        %320 = vrot.lane.b32.xlu0 %v313, 16
        %v321 = vpop.permute.xlu0 %320
        %322 = vrot.lane.b32.xlu0 %v319, 16
        %v323 = vpop.permute.xlu0 %322
        %324 = vrot.lane.b32.xlu0 %v314, 16
        %v325 = vpop.permute.xlu0 %324
        %vm326 = vcmask 130048
        %v327 = vsel %vm326, %v321, %v323
        %v328 = vsel %vm326, %v323, %v325
        %v330 = vsel %vm229, %v316, 0
        %v332 = vsel %vm233, %v327, 0
        %v334 = vsel %vm233, %v328, 0
        %336 = vmatprep.subr.mxu0 %v334
        %337 = vmatpush1.msra.mxu0 %v332
        %338 = vmatprep.subr.mxu0 0.0
        %339 = vmatpush1.msra.mxu0 0.0
        %340 = vmatprep.subr.mxu0 0.0
        %341 = vmatpush1.msra.mxu0 0.0
        %342 = vmatprep.subr.mxu0 0.0
        %343 = vmatpush1.msra.mxu0 0.0
        %344 = vmatprep.subr.mxu0 0.0
        %345 = vmatpush1.msra.mxu0 0.0
        %346 = vmatprep.subr.mxu0 0.0
        %347 = vmatpush1.msra.mxu0 0.0
        %348 = vmatprep.subr.mxu0 0.0
        %349 = vmatpush1.msra.mxu0 0.0
        %350 = vmatprep.subr.mxu0 0.0
        %351 = vmatpush1.msra.mxu0 0.0
        %352 = vmatprep.subr.mxu0 0.0
        %353 = vmatpush1.msra.mxu0 0.0
        %354 = vmatprep.subr.mxu0 0.0
        %355 = vmatpush1.msra.mxu0 0.0
        %356 = vmatprep.subr.mxu0 0.0
        %357 = vmatpush1.msra.mxu0 0.0
        %358 = vmatprep.subr.mxu0 0.0
        %359 = vmatpush1.msra.mxu0 0.0
        %360 = vmatprep.subr.mxu0 0.0
        %361 = vmatpush1.msra.mxu0 0.0
        %362 = vmatprep.subr.mxu0 0.0
        %363 = vmatpush1.msra.mxu0 0.0
        %364 = vmatprep.subr.mxu0 0.0
        %365 = vmatpush1.msra.mxu0 0.0
        %366 = vmatprep.subr.mxu0 0.0
        %367 = vmatpush1.msra.mxu0 0.0
        %368 = vmatprep.subr.mxu0 0.0
        %369 = vmatpush1.msra.mxu0 0.0
        %370 = vmatprep.subr.mxu0 0.0
        %371 = vmatpush1.msra.mxu0 0.0
        %372 = vmatprep.subr.mxu0 0.0
        %373 = vmatpush1.msra.mxu0 0.0
        %374 = vmatprep.subr.mxu0 0.0
        %375 = vmatpush1.msra.mxu0 0.0
        %376 = vmatprep.subr.mxu0 0.0
        %377 = vmatpush1.msra.mxu0 0.0
        %378 = vmatprep.subr.mxu0 0.0
        %379 = vmatpush1.msra.mxu0 0.0
        %380 = vmatprep.subr.mxu0 0.0
        %381 = vmatpush1.msra.mxu0 0.0
        %382 = vmatprep.subr.mxu0 0.0
        %383 = vmatpush1.msra.mxu0 0.0
        %384 = vmatprep.subr.mxu0 0.0
        %385 = vmatpush1.msra.mxu0 0.0
        %386 = vmatprep.subr.mxu0 0.0
        %387 = vmatpush1.msra.mxu0 0.0
        %388 = vmatprep.subr.mxu0 0.0
        %389 = vmatpush1.msra.mxu0 0.0
        %390 = vmatprep.subr.mxu0 0.0
        %391 = vmatpush1.msra.mxu0 0.0
        %392 = vmatprep.subr.mxu0 0.0
        %393 = vmatpush1.msra.mxu0 0.0
        %394 = vmatprep.subr.mxu0 0.0
        %395 = vmatpush1.msra.mxu0 0.0
        %396 = vmatprep.subr.mxu0 0.0
        %397 = vmatpush1.msra.mxu0 0.0
        %398 = vmatprep.subr.mxu0 0.0
        %399 = vmatpush1.msra.mxu0 0.0
        %400 = vmatprep.mubr.f32.mxu0 0.0
        %401 = vmatmul.mubr.f32.gmra.mrb[0].mxu0 %v330
        %v402 = vpop.f32.mrb[0].mxu0
        %v403 = vadd.f32 0.0, %v402
        %v404 = vpop.f32.mrb[0].mxu0
        %v405 = vadd.f32 0.0, %v404
        %406 = vdwg.mxu0
        %v407 = vadd.f32 %v311, %v403
        %v408 = vadd.f32 %v312, %v405
        %v409 = vld [vmem:[#allocation2] sm:$0xff]
        %v410 = vld [vmem:[#allocation2 + $0x8] sm:$0xf]
        %v413 = vcombine.high %v409, %v409
        %414 = vrot.lane.b32.xlu0 %v409, 15
        %v415 = vpop.permute.xlu0 %414
        %416 = vrot.lane.b32.xlu0 %v413, 15
        %v417 = vpop.permute.xlu0 %416
        %418 = vrot.lane.b32.xlu0 %v410, 15
        %v419 = vpop.permute.xlu0 %418
        %vm420 = vcmask 121856
        %v421 = vsel %vm420, %v415, %v417
        %v422 = vsel %vm420, %v417, %v419
        %v425 = vsel %vm202, %v421, 0.0
        %v426 = vsel %vm203, %v422, 0.0
        %s427 = scalar_lea.vmem %s1, 8
        %v428 = vld [vmem:[%s427] sm:$0xf]
        %v430 = vsel %vm229, %v428, 0
        %v433 = vsel %vm233, %v425, 0
        %v436 = vsel %vm233, %v426, 0
        %438 = vmatprep.subr.mxu0 %v436
        %439 = vmatpush1.msra.mxu0 %v433
        %440 = vmatprep.subr.mxu0 0.0
        %441 = vmatpush1.msra.mxu0 0.0
        %442 = vmatprep.subr.mxu0 0.0
        %443 = vmatpush1.msra.mxu0 0.0
        %444 = vmatprep.subr.mxu0 0.0
        %445 = vmatpush1.msra.mxu0 0.0
        %446 = vmatprep.subr.mxu0 0.0
        %447 = vmatpush1.msra.mxu0 0.0
        %448 = vmatprep.subr.mxu0 0.0
        %449 = vmatpush1.msra.mxu0 0.0
        %450 = vmatprep.subr.mxu0 0.0
        %451 = vmatpush1.msra.mxu0 0.0
        %452 = vmatprep.subr.mxu0 0.0
        %453 = vmatpush1.msra.mxu0 0.0
        %454 = vmatprep.subr.mxu0 0.0
        %455 = vmatpush1.msra.mxu0 0.0
        %456 = vmatprep.subr.mxu0 0.0
        %457 = vmatpush1.msra.mxu0 0.0
        %458 = vmatprep.subr.mxu0 0.0
        %459 = vmatpush1.msra.mxu0 0.0
        %460 = vmatprep.subr.mxu0 0.0
        %461 = vmatpush1.msra.mxu0 0.0
        %462 = vmatprep.subr.mxu0 0.0
        %463 = vmatpush1.msra.mxu0 0.0
        %464 = vmatprep.subr.mxu0 0.0
        %465 = vmatpush1.msra.mxu0 0.0
        %466 = vmatprep.subr.mxu0 0.0
        %467 = vmatpush1.msra.mxu0 0.0
        %468 = vmatprep.subr.mxu0 0.0
        %469 = vmatpush1.msra.mxu0 0.0
        %470 = vmatprep.subr.mxu0 0.0
        %471 = vmatpush1.msra.mxu0 0.0
        %472 = vmatprep.subr.mxu0 0.0
        %473 = vmatpush1.msra.mxu0 0.0
        %474 = vmatprep.subr.mxu0 0.0
        %475 = vmatpush1.msra.mxu0 0.0
        %476 = vmatprep.subr.mxu0 0.0
        %477 = vmatpush1.msra.mxu0 0.0
        %478 = vmatprep.subr.mxu0 0.0
        %479 = vmatpush1.msra.mxu0 0.0
        %480 = vmatprep.subr.mxu0 0.0
        %481 = vmatpush1.msra.mxu0 0.0
        %482 = vmatprep.subr.mxu0 0.0
        %483 = vmatpush1.msra.mxu0 0.0
        %484 = vmatprep.subr.mxu0 0.0
        %485 = vmatpush1.msra.mxu0 0.0
        %486 = vmatprep.subr.mxu0 0.0
        %487 = vmatpush1.msra.mxu0 0.0
        %488 = vmatprep.subr.mxu0 0.0
        %489 = vmatpush1.msra.mxu0 0.0
        %490 = vmatprep.subr.mxu0 0.0
        %491 = vmatpush1.msra.mxu0 0.0
        %492 = vmatprep.subr.mxu0 0.0
        %493 = vmatpush1.msra.mxu0 0.0
        %494 = vmatprep.subr.mxu0 0.0
        %495 = vmatpush1.msra.mxu0 0.0
        %496 = vmatprep.subr.mxu0 0.0
        %497 = vmatpush1.msra.mxu0 0.0
        %498 = vmatprep.subr.mxu0 0.0
        %499 = vmatpush1.msra.mxu0 0.0
        %500 = vmatprep.subr.mxu0 0.0
        %501 = vmatpush1.msra.mxu0 0.0
        %502 = vmatprep.mubr.f32.mxu0 0.0
        %503 = vmatmul.mubr.f32.gmra.mrb[0].mxu0 %v430
        %v504 = vpop.f32.mrb[0].mxu0
        %v505 = vadd.f32 0.0, %v504
        %v506 = vpop.f32.mrb[0].mxu0
        %v507 = vadd.f32 0.0, %v506
        %508 = vdwg.mxu0
        %v509 = vadd.f32 %v407, %v505
        %v510 = vadd.f32 %v408, %v507
        %v511 = vld [vmem:[#allocation2] sm:$0xff]
        %v512 = vld [vmem:[#allocation2 + $0x8] sm:$0xf]
        %v515 = vcombine.high %v511, %v511
        %516 = vrot.lane.b32.xlu0 %v511, 1
        %v517 = vpop.permute.xlu0 %516
        %518 = vrot.lane.b32.xlu0 %v515, 1
        %v519 = vpop.permute.xlu0 %518
        %520 = vrot.lane.b32.xlu0 %v512, 1
        %v521 = vpop.permute.xlu0 %520
        %vm522 = vcmask 7168
        %v523 = vsel %vm522, %v517, %v519
        %v524 = vsel %vm522, %v519, %v521
        %v527 = vsel %vm200, %v523, 0.0
        %v528 = vsel %vm201, %v524, 0.0
        %s529 = scalar_lea.vmem %s1, 12
        %v530 = vld [vmem:[%s529] sm:$0xf]
        %v532 = vsel %vm229, %v530, 0
        %v535 = vsel %vm233, %v527, 0
        %v538 = vsel %vm233, %v528, 0
        %540 = vmatprep.subr.mxu0 %v538
        %541 = vmatpush1.msra.mxu0 %v535
        %542 = vmatprep.subr.mxu0 0.0
        %543 = vmatpush1.msra.mxu0 0.0
        %544 = vmatprep.subr.mxu0 0.0
        %545 = vmatpush1.msra.mxu0 0.0
        %546 = vmatprep.subr.mxu0 0.0
        %547 = vmatpush1.msra.mxu0 0.0
        %548 = vmatprep.subr.mxu0 0.0
        %549 = vmatpush1.msra.mxu0 0.0
        %550 = vmatprep.subr.mxu0 0.0
        %551 = vmatpush1.msra.mxu0 0.0
        %552 = vmatprep.subr.mxu0 0.0
        %553 = vmatpush1.msra.mxu0 0.0
        %554 = vmatprep.subr.mxu0 0.0
        %555 = vmatpush1.msra.mxu0 0.0
        %556 = vmatprep.subr.mxu0 0.0
        %557 = vmatpush1.msra.mxu0 0.0
        %558 = vmatprep.subr.mxu0 0.0
        %559 = vmatpush1.msra.mxu0 0.0
        %560 = vmatprep.subr.mxu0 0.0
        %561 = vmatpush1.msra.mxu0 0.0
        %562 = vmatprep.subr.mxu0 0.0
        %563 = vmatpush1.msra.mxu0 0.0
        %564 = vmatprep.subr.mxu0 0.0
        %565 = vmatpush1.msra.mxu0 0.0
        %566 = vmatprep.subr.mxu0 0.0
        %567 = vmatpush1.msra.mxu0 0.0
        %568 = vmatprep.subr.mxu0 0.0
        %569 = vmatpush1.msra.mxu0 0.0
        %570 = vmatprep.subr.mxu0 0.0
        %571 = vmatpush1.msra.mxu0 0.0
        %572 = vmatprep.subr.mxu0 0.0
        %573 = vmatpush1.msra.mxu0 0.0
        %574 = vmatprep.subr.mxu0 0.0
        %575 = vmatpush1.msra.mxu0 0.0
        %576 = vmatprep.subr.mxu0 0.0
        %577 = vmatpush1.msra.mxu0 0.0
        %578 = vmatprep.subr.mxu0 0.0
        %579 = vmatpush1.msra.mxu0 0.0
        %580 = vmatprep.subr.mxu0 0.0
        %581 = vmatpush1.msra.mxu0 0.0
        %582 = vmatprep.subr.mxu0 0.0
        %583 = vmatpush1.msra.mxu0 0.0
        %584 = vmatprep.subr.mxu0 0.0
        %585 = vmatpush1.msra.mxu0 0.0
        %586 = vmatprep.subr.mxu0 0.0
        %587 = vmatpush1.msra.mxu0 0.0
        %588 = vmatprep.subr.mxu0 0.0
        %589 = vmatpush1.msra.mxu0 0.0
        %590 = vmatprep.subr.mxu0 0.0
        %591 = vmatpush1.msra.mxu0 0.0
        %592 = vmatprep.subr.mxu0 0.0
        %593 = vmatpush1.msra.mxu0 0.0
        %594 = vmatprep.subr.mxu0 0.0
        %595 = vmatpush1.msra.mxu0 0.0
        %596 = vmatprep.subr.mxu0 0.0
        %597 = vmatpush1.msra.mxu0 0.0
        %598 = vmatprep.subr.mxu0 0.0
        %599 = vmatpush1.msra.mxu0 0.0
        %600 = vmatprep.subr.mxu0 0.0
        %601 = vmatpush1.msra.mxu0 0.0
        %602 = vmatprep.subr.mxu0 0.0
        %603 = vmatpush1.msra.mxu0 0.0
        %604 = vmatprep.mubr.f32.mxu0 0.0
        %605 = vmatmul.mubr.f32.gmra.mrb[0].mxu0 %v532
        %v606 = vpop.f32.mrb[0].mxu0
        %v607 = vadd.f32 0.0, %v606
        %v608 = vpop.f32.mrb[0].mxu0
        %v609 = vadd.f32 0.0, %v608
        %610 = vdwg.mxu0
        %v611 = vadd.f32 %v509, %v607
        %v612 = vadd.f32 %v510, %v609
        %s613 = scalar_lea.vmem %s1, 16
        %v614 = vld [vmem:[%s613] sm:$0xf]
        %v616 = vcombine.high %v169, %v169
        %v618 = vsel %vm229, %v614, 0
        %v620 = vsel %vm233, %v169, 0
        %v622 = vsel %vm233, %v616, 0
        %624 = vmatprep.subr.mxu0 %v622
        %625 = vmatpush1.msra.mxu0 %v620
        %626 = vmatprep.subr.mxu0 0.0
        %627 = vmatpush1.msra.mxu0 0.0
        %628 = vmatprep.subr.mxu0 0.0
        %629 = vmatpush1.msra.mxu0 0.0
        %630 = vmatprep.subr.mxu0 0.0
        %631 = vmatpush1.msra.mxu0 0.0
        %632 = vmatprep.subr.mxu0 0.0
        %633 = vmatpush1.msra.mxu0 0.0
        %634 = vmatprep.subr.mxu0 0.0
        %635 = vmatpush1.msra.mxu0 0.0
        %636 = vmatprep.subr.mxu0 0.0
        %637 = vmatpush1.msra.mxu0 0.0
        %638 = vmatprep.subr.mxu0 0.0
        %639 = vmatpush1.msra.mxu0 0.0
        %640 = vmatprep.subr.mxu0 0.0
        %641 = vmatpush1.msra.mxu0 0.0
        %642 = vmatprep.subr.mxu0 0.0
        %643 = vmatpush1.msra.mxu0 0.0
        %644 = vmatprep.subr.mxu0 0.0
        %645 = vmatpush1.msra.mxu0 0.0
        %646 = vmatprep.subr.mxu0 0.0
        %647 = vmatpush1.msra.mxu0 0.0
        %648 = vmatprep.subr.mxu0 0.0
        %649 = vmatpush1.msra.mxu0 0.0
        %650 = vmatprep.subr.mxu0 0.0
        %651 = vmatpush1.msra.mxu0 0.0
        %652 = vmatprep.subr.mxu0 0.0
        %653 = vmatpush1.msra.mxu0 0.0
        %654 = vmatprep.subr.mxu0 0.0
        %655 = vmatpush1.msra.mxu0 0.0
        %656 = vmatprep.subr.mxu0 0.0
        %657 = vmatpush1.msra.mxu0 0.0
        %658 = vmatprep.subr.mxu0 0.0
        %659 = vmatpush1.msra.mxu0 0.0
        %660 = vmatprep.subr.mxu0 0.0
        %661 = vmatpush1.msra.mxu0 0.0
        %662 = vmatprep.subr.mxu0 0.0
        %663 = vmatpush1.msra.mxu0 0.0
        %664 = vmatprep.subr.mxu0 0.0
        %665 = vmatpush1.msra.mxu0 0.0
        %666 = vmatprep.subr.mxu0 0.0
        %667 = vmatpush1.msra.mxu0 0.0
        %668 = vmatprep.subr.mxu0 0.0
        %669 = vmatpush1.msra.mxu0 0.0
        %670 = vmatprep.subr.mxu0 0.0
        %671 = vmatpush1.msra.mxu0 0.0
        %672 = vmatprep.subr.mxu0 0.0
        %673 = vmatpush1.msra.mxu0 0.0
        %674 = vmatprep.subr.mxu0 0.0
        %675 = vmatpush1.msra.mxu0 0.0
        %676 = vmatprep.subr.mxu0 0.0
        %677 = vmatpush1.msra.mxu0 0.0
        %678 = vmatprep.subr.mxu0 0.0
        %679 = vmatpush1.msra.mxu0 0.0
        %680 = vmatprep.subr.mxu0 0.0
        %681 = vmatpush1.msra.mxu0 0.0
        %682 = vmatprep.subr.mxu0 0.0
        %683 = vmatpush1.msra.mxu0 0.0
        %684 = vmatprep.subr.mxu0 0.0
        %685 = vmatpush1.msra.mxu0 0.0
        %686 = vmatprep.subr.mxu0 0.0
        %687 = vmatpush1.msra.mxu0 0.0
        %688 = vmatprep.mubr.f32.mxu0 0.0
        %689 = vmatmul.mubr.f32.gmra.mrb[0].mxu0 %v618
        %v690 = vpop.f32.mrb[0].mxu0
        %v691 = vadd.f32 0.0, %v690
        %v692 = vpop.f32.mrb[0].mxu0
        %v693 = vadd.f32 0.0, %v692
        %694 = vdwg.mxu0
        %v695 = vadd.f32 %v611, %v691
        %v696 = vadd.f32 %v612, %v693
        %v697 = vld [vmem:[#allocation2 + $0x4] sm:$0xff]
        %v698 = vld [vmem:[#allocation2 + $0xc] sm:$0xf]
        %v701 = vcombine.high %v697, %v697
        %702 = vrot.lane.b32.xlu0 %v697, 127
        %v703 = vpop.permute.xlu0 %702
        %704 = vrot.lane.b32.xlu0 %v701, 127
        %v705 = vpop.permute.xlu0 %704
        %706 = vrot.lane.b32.xlu0 %v698, 127
        %v707 = vpop.permute.xlu0 %706
        %vm708 = vcmask 1039360
        %v709 = vsel %vm708, %v703, %v705
        %v710 = vsel %vm708, %v705, %v707
        %v713 = vsel %vm202, %v709, 0.0
        %v714 = vsel %vm203, %v710, 0.0
        %s715 = scalar_lea.vmem %s1, 20
        %v716 = vld [vmem:[%s715] sm:$0xf]
        %v718 = vsel %vm229, %v716, 0
        %v721 = vsel %vm233, %v713, 0
        %v724 = vsel %vm233, %v714, 0
        %726 = vmatprep.subr.mxu0 %v724
        %727 = vmatpush1.msra.mxu0 %v721
        %728 = vmatprep.subr.mxu0 0.0
        %729 = vmatpush1.msra.mxu0 0.0
        %730 = vmatprep.subr.mxu0 0.0
        %731 = vmatpush1.msra.mxu0 0.0
        %732 = vmatprep.subr.mxu0 0.0
        %733 = vmatpush1.msra.mxu0 0.0
        %734 = vmatprep.subr.mxu0 0.0
        %735 = vmatpush1.msra.mxu0 0.0
        %736 = vmatprep.subr.mxu0 0.0
        %737 = vmatpush1.msra.mxu0 0.0
        %738 = vmatprep.subr.mxu0 0.0
        %739 = vmatpush1.msra.mxu0 0.0
        %740 = vmatprep.subr.mxu0 0.0
        %741 = vmatpush1.msra.mxu0 0.0
        %742 = vmatprep.subr.mxu0 0.0
        %743 = vmatpush1.msra.mxu0 0.0
        %744 = vmatprep.subr.mxu0 0.0
        %745 = vmatpush1.msra.mxu0 0.0
        %746 = vmatprep.subr.mxu0 0.0
        %747 = vmatpush1.msra.mxu0 0.0
        %748 = vmatprep.subr.mxu0 0.0
        %749 = vmatpush1.msra.mxu0 0.0
        %750 = vmatprep.subr.mxu0 0.0
        %751 = vmatpush1.msra.mxu0 0.0
        %752 = vmatprep.subr.mxu0 0.0
        %753 = vmatpush1.msra.mxu0 0.0
        %754 = vmatprep.subr.mxu0 0.0
        %755 = vmatpush1.msra.mxu0 0.0
        %756 = vmatprep.subr.mxu0 0.0
        %757 = vmatpush1.msra.mxu0 0.0
        %758 = vmatprep.subr.mxu0 0.0
        %759 = vmatpush1.msra.mxu0 0.0
        %760 = vmatprep.subr.mxu0 0.0
        %761 = vmatpush1.msra.mxu0 0.0
        %762 = vmatprep.subr.mxu0 0.0
        %763 = vmatpush1.msra.mxu0 0.0
        %764 = vmatprep.subr.mxu0 0.0
        %765 = vmatpush1.msra.mxu0 0.0
        %766 = vmatprep.subr.mxu0 0.0
        %767 = vmatpush1.msra.mxu0 0.0
        %768 = vmatprep.subr.mxu0 0.0
        %769 = vmatpush1.msra.mxu0 0.0
        %770 = vmatprep.subr.mxu0 0.0
        %771 = vmatpush1.msra.mxu0 0.0
        %772 = vmatprep.subr.mxu0 0.0
        %773 = vmatpush1.msra.mxu0 0.0
        %774 = vmatprep.subr.mxu0 0.0
        %775 = vmatpush1.msra.mxu0 0.0
        %776 = vmatprep.subr.mxu0 0.0
        %777 = vmatpush1.msra.mxu0 0.0
        %778 = vmatprep.subr.mxu0 0.0
        %779 = vmatpush1.msra.mxu0 0.0
        %780 = vmatprep.subr.mxu0 0.0
        %781 = vmatpush1.msra.mxu0 0.0
        %782 = vmatprep.subr.mxu0 0.0
        %783 = vmatpush1.msra.mxu0 0.0
        %784 = vmatprep.subr.mxu0 0.0
        %785 = vmatpush1.msra.mxu0 0.0
        %786 = vmatprep.subr.mxu0 0.0
        %787 = vmatpush1.msra.mxu0 0.0
        %788 = vmatprep.subr.mxu0 0.0
        %789 = vmatpush1.msra.mxu0 0.0
        %790 = vmatprep.mubr.f32.mxu0 0.0
        %791 = vmatmul.mubr.f32.gmra.mrb[0].mxu0 %v718
        %v792 = vpop.f32.mrb[0].mxu0
        %v793 = vadd.f32 0.0, %v792
        %v794 = vpop.f32.mrb[0].mxu0
        %v795 = vadd.f32 0.0, %v794
        %796 = vdwg.mxu0
        %v797 = vadd.f32 %v695, %v793
        %v798 = vadd.f32 %v696, %v795
        %v799 = vld [vmem:[#allocation2 + $0x4] sm:$0xff]
        %v800 = vld [vmem:[#allocation2 + $0xc] sm:$0xf]
        %v803 = vcombine.high %v799, %v799
        %804 = vrot.lane.b32.xlu0 %v799, 113
        %v805 = vpop.permute.xlu0 %804
        %806 = vrot.lane.b32.xlu0 %v803, 113
        %v807 = vpop.permute.xlu0 %806
        %808 = vrot.lane.b32.xlu0 %v800, 113
        %v809 = vpop.permute.xlu0 %808
        %vm810 = vcmask 924672
        %v811 = vsel %vm810, %v805, %v807
        %v812 = vsel %vm810, %v807, %v809
        %v815 = vsel %vm200, %v811, 0.0
        %v816 = vsel %vm201, %v812, 0.0
        %s817 = scalar_lea.vmem %s1, 24
        %v818 = vld [vmem:[%s817] sm:$0xf]
        %v820 = vsel %vm229, %v818, 0
        %v823 = vsel %vm233, %v815, 0
        %v826 = vsel %vm233, %v816, 0
        %828 = vmatprep.subr.mxu0 %v826
        %829 = vmatpush1.msra.mxu0 %v823
        %830 = vmatprep.subr.mxu0 0.0
        %831 = vmatpush1.msra.mxu0 0.0
        %832 = vmatprep.subr.mxu0 0.0
        %833 = vmatpush1.msra.mxu0 0.0
        %834 = vmatprep.subr.mxu0 0.0
        %835 = vmatpush1.msra.mxu0 0.0
        %836 = vmatprep.subr.mxu0 0.0
        %837 = vmatpush1.msra.mxu0 0.0
        %838 = vmatprep.subr.mxu0 0.0
        %839 = vmatpush1.msra.mxu0 0.0
        %840 = vmatprep.subr.mxu0 0.0
        %841 = vmatpush1.msra.mxu0 0.0
        %842 = vmatprep.subr.mxu0 0.0
        %843 = vmatpush1.msra.mxu0 0.0
        %844 = vmatprep.subr.mxu0 0.0
        %845 = vmatpush1.msra.mxu0 0.0
        %846 = vmatprep.subr.mxu0 0.0
        %847 = vmatpush1.msra.mxu0 0.0
        %848 = vmatprep.subr.mxu0 0.0
        %849 = vmatpush1.msra.mxu0 0.0
        %850 = vmatprep.subr.mxu0 0.0
        %851 = vmatpush1.msra.mxu0 0.0
        %852 = vmatprep.subr.mxu0 0.0
        %853 = vmatpush1.msra.mxu0 0.0
        %854 = vmatprep.subr.mxu0 0.0
        %855 = vmatpush1.msra.mxu0 0.0
        %856 = vmatprep.subr.mxu0 0.0
        %857 = vmatpush1.msra.mxu0 0.0
        %858 = vmatprep.subr.mxu0 0.0
        %859 = vmatpush1.msra.mxu0 0.0
        %860 = vmatprep.subr.mxu0 0.0
        %861 = vmatpush1.msra.mxu0 0.0
        %862 = vmatprep.subr.mxu0 0.0
        %863 = vmatpush1.msra.mxu0 0.0
        %864 = vmatprep.subr.mxu0 0.0
        %865 = vmatpush1.msra.mxu0 0.0
        %866 = vmatprep.subr.mxu0 0.0
        %867 = vmatpush1.msra.mxu0 0.0
        %868 = vmatprep.subr.mxu0 0.0
        %869 = vmatpush1.msra.mxu0 0.0
        %870 = vmatprep.subr.mxu0 0.0
        %871 = vmatpush1.msra.mxu0 0.0
        %872 = vmatprep.subr.mxu0 0.0
        %873 = vmatpush1.msra.mxu0 0.0
        %874 = vmatprep.subr.mxu0 0.0
        %875 = vmatpush1.msra.mxu0 0.0
        %876 = vmatprep.subr.mxu0 0.0
        %877 = vmatpush1.msra.mxu0 0.0
        %878 = vmatprep.subr.mxu0 0.0
        %879 = vmatpush1.msra.mxu0 0.0
        %880 = vmatprep.subr.mxu0 0.0
        %881 = vmatpush1.msra.mxu0 0.0
        %882 = vmatprep.subr.mxu0 0.0
        %883 = vmatpush1.msra.mxu0 0.0
        %884 = vmatprep.subr.mxu0 0.0
        %885 = vmatpush1.msra.mxu0 0.0
        %886 = vmatprep.subr.mxu0 0.0
        %887 = vmatpush1.msra.mxu0 0.0
        %888 = vmatprep.subr.mxu0 0.0
        %889 = vmatpush1.msra.mxu0 0.0
        %890 = vmatprep.subr.mxu0 0.0
        %891 = vmatpush1.msra.mxu0 0.0
        %892 = vmatprep.mubr.f32.mxu0 0.0
        %893 = vmatmul.mubr.f32.gmra.mrb[0].mxu0 %v820
        %v894 = vpop.f32.mrb[0].mxu0
        %v895 = vadd.f32 0.0, %v894
        %v896 = vpop.f32.mrb[0].mxu0
        %v897 = vadd.f32 0.0, %v896
        %898 = vdwg.mxu0
        %v899 = vadd.f32 %v797, %v895
        %v900 = vadd.f32 %v798, %v897
        %v901 = vld [vmem:[#allocation2 + $0x4] sm:$0xff]
        %v902 = vld [vmem:[#allocation2 + $0xc] sm:$0xf]
        %s903 = scalar_lea.vmem %s1, 28
        %v904 = vld [vmem:[%s903] sm:$0xf]
        %v907 = vcombine.high %v901, %v901
        %908 = vrot.lane.b32.xlu0 %v901, 112
        %v909 = vpop.permute.xlu0 %908
        %910 = vrot.lane.b32.xlu0 %v907, 112
        %v911 = vpop.permute.xlu0 %910
        %912 = vrot.lane.b32.xlu0 %v902, 112
        %v913 = vpop.permute.xlu0 %912
        %vm914 = vcmask 916480
        %v915 = vsel %vm914, %v909, %v911
        %v916 = vsel %vm914, %v911, %v913
        %v918 = vsel %vm229, %v904, 0
        %v920 = vsel %vm233, %v915, 0
        %v922 = vsel %vm233, %v916, 0
        %924 = vmatprep.subr.mxu0 %v922
        %925 = vmatpush1.msra.mxu0 %v920
        %926 = vmatprep.subr.mxu0 0.0
        %927 = vmatpush1.msra.mxu0 0.0
        %928 = vmatprep.subr.mxu0 0.0
        %929 = vmatpush1.msra.mxu0 0.0
        %930 = vmatprep.subr.mxu0 0.0
        %931 = vmatpush1.msra.mxu0 0.0
        %932 = vmatprep.subr.mxu0 0.0
        %933 = vmatpush1.msra.mxu0 0.0
        %934 = vmatprep.subr.mxu0 0.0
        %935 = vmatpush1.msra.mxu0 0.0
        %936 = vmatprep.subr.mxu0 0.0
        %937 = vmatpush1.msra.mxu0 0.0
        %938 = vmatprep.subr.mxu0 0.0
        %939 = vmatpush1.msra.mxu0 0.0
        %940 = vmatprep.subr.mxu0 0.0
        %941 = vmatpush1.msra.mxu0 0.0
        %942 = vmatprep.subr.mxu0 0.0
        %943 = vmatpush1.msra.mxu0 0.0
        %944 = vmatprep.subr.mxu0 0.0
        %945 = vmatpush1.msra.mxu0 0.0
        %946 = vmatprep.subr.mxu0 0.0
        %947 = vmatpush1.msra.mxu0 0.0
        %948 = vmatprep.subr.mxu0 0.0
        %949 = vmatpush1.msra.mxu0 0.0
        %950 = vmatprep.subr.mxu0 0.0
        %951 = vmatpush1.msra.mxu0 0.0
        %952 = vmatprep.subr.mxu0 0.0
        %953 = vmatpush1.msra.mxu0 0.0
        %954 = vmatprep.subr.mxu0 0.0
        %955 = vmatpush1.msra.mxu0 0.0
        %956 = vmatprep.subr.mxu0 0.0
        %957 = vmatpush1.msra.mxu0 0.0
        %958 = vmatprep.subr.mxu0 0.0
        %959 = vmatpush1.msra.mxu0 0.0
        %960 = vmatprep.subr.mxu0 0.0
        %961 = vmatpush1.msra.mxu0 0.0
        %962 = vmatprep.subr.mxu0 0.0
        %963 = vmatpush1.msra.mxu0 0.0
        %964 = vmatprep.subr.mxu0 0.0
        %965 = vmatpush1.msra.mxu0 0.0
        %966 = vmatprep.subr.mxu0 0.0
        %967 = vmatpush1.msra.mxu0 0.0
        %968 = vmatprep.subr.mxu0 0.0
        %969 = vmatpush1.msra.mxu0 0.0
        %970 = vmatprep.subr.mxu0 0.0
        %971 = vmatpush1.msra.mxu0 0.0
        %972 = vmatprep.subr.mxu0 0.0
        %973 = vmatpush1.msra.mxu0 0.0
        %974 = vmatprep.subr.mxu0 0.0
        %975 = vmatpush1.msra.mxu0 0.0
        %976 = vmatprep.subr.mxu0 0.0
        %977 = vmatpush1.msra.mxu0 0.0
        %978 = vmatprep.subr.mxu0 0.0
        %979 = vmatpush1.msra.mxu0 0.0
        %980 = vmatprep.subr.mxu0 0.0
        %981 = vmatpush1.msra.mxu0 0.0
        %982 = vmatprep.subr.mxu0 0.0
        %983 = vmatpush1.msra.mxu0 0.0
        %984 = vmatprep.subr.mxu0 0.0
        %985 = vmatpush1.msra.mxu0 0.0
        %986 = vmatprep.subr.mxu0 0.0
        %987 = vmatpush1.msra.mxu0 0.0
        %988 = vmatprep.mubr.f32.mxu0 0.0
        %989 = vmatmul.mubr.f32.gmra.mrb[0].mxu0 %v918
        %v990 = vpop.f32.mrb[0].mxu0
        %v991 = vadd.f32 0.0, %v990
        %v992 = vpop.f32.mrb[0].mxu0
        %v993 = vadd.f32 0.0, %v992
        %994 = vdwg.mxu0
        %v995 = vadd.f32 %v899, %v991
        %v996 = vadd.f32 %v900, %v993
        %v997 = vld [vmem:[#allocation2 + $0x4] sm:$0xff]
        %v998 = vld [vmem:[#allocation2 + $0xc] sm:$0xf]
        %v1001 = vcombine.high %v997, %v997
        %1002 = vrot.lane.b32.xlu0 %v997, 111
        %v1003 = vpop.permute.xlu0 %1002
        %1004 = vrot.lane.b32.xlu0 %v1001, 111
        %v1005 = vpop.permute.xlu0 %1004
        %1006 = vrot.lane.b32.xlu0 %v998, 111
        %v1007 = vpop.permute.xlu0 %1006
        %vm1008 = vcmask 908288
        %v1009 = vsel %vm1008, %v1003, %v1005
        %v1010 = vsel %vm1008, %v1005, %v1007
        %v1013 = vsel %vm202, %v1009, 0.0
        %v1014 = vsel %vm203, %v1010, 0.0
        %s1015 = scalar_lea.vmem %s1, 32
        %v1016 = vld [vmem:[%s1015] sm:$0xf]
        %v1018 = vsel %vm229, %v1016, 0
        %v1021 = vsel %vm233, %v1013, 0
        %v1024 = vsel %vm233, %v1014, 0
        %1026 = vmatprep.subr.mxu0 %v1024
        %1027 = vmatpush1.msra.mxu0 %v1021
        %1028 = vmatprep.subr.mxu0 0.0
        %1029 = vmatpush1.msra.mxu0 0.0
        %1030 = vmatprep.subr.mxu0 0.0
        %1031 = vmatpush1.msra.mxu0 0.0
        %1032 = vmatprep.subr.mxu0 0.0
        %1033 = vmatpush1.msra.mxu0 0.0
        %1034 = vmatprep.subr.mxu0 0.0
        %1035 = vmatpush1.msra.mxu0 0.0
        %1036 = vmatprep.subr.mxu0 0.0
        %1037 = vmatpush1.msra.mxu0 0.0
        %1038 = vmatprep.subr.mxu0 0.0
        %1039 = vmatpush1.msra.mxu0 0.0
        %1040 = vmatprep.subr.mxu0 0.0
        %1041 = vmatpush1.msra.mxu0 0.0
        %1042 = vmatprep.subr.mxu0 0.0
        %1043 = vmatpush1.msra.mxu0 0.0
        %1044 = vmatprep.subr.mxu0 0.0
        %1045 = vmatpush1.msra.mxu0 0.0
        %1046 = vmatprep.subr.mxu0 0.0
        %1047 = vmatpush1.msra.mxu0 0.0
        %1048 = vmatprep.subr.mxu0 0.0
        %1049 = vmatpush1.msra.mxu0 0.0
        %1050 = vmatprep.subr.mxu0 0.0
        %1051 = vmatpush1.msra.mxu0 0.0
        %1052 = vmatprep.subr.mxu0 0.0
        %1053 = vmatpush1.msra.mxu0 0.0
        %1054 = vmatprep.subr.mxu0 0.0
        %1055 = vmatpush1.msra.mxu0 0.0
        %1056 = vmatprep.subr.mxu0 0.0
        %1057 = vmatpush1.msra.mxu0 0.0
        %1058 = vmatprep.subr.mxu0 0.0
        %1059 = vmatpush1.msra.mxu0 0.0
        %1060 = vmatprep.subr.mxu0 0.0
        %1061 = vmatpush1.msra.mxu0 0.0
        %1062 = vmatprep.subr.mxu0 0.0
        %1063 = vmatpush1.msra.mxu0 0.0
        %1064 = vmatprep.subr.mxu0 0.0
        %1065 = vmatpush1.msra.mxu0 0.0
        %1066 = vmatprep.subr.mxu0 0.0
        %1067 = vmatpush1.msra.mxu0 0.0
        %1068 = vmatprep.subr.mxu0 0.0
        %1069 = vmatpush1.msra.mxu0 0.0
        %1070 = vmatprep.subr.mxu0 0.0
        %1071 = vmatpush1.msra.mxu0 0.0
        %1072 = vmatprep.subr.mxu0 0.0
        %1073 = vmatpush1.msra.mxu0 0.0
        %1074 = vmatprep.subr.mxu0 0.0
        %1075 = vmatpush1.msra.mxu0 0.0
        %1076 = vmatprep.subr.mxu0 0.0
        %1077 = vmatpush1.msra.mxu0 0.0
        %1078 = vmatprep.subr.mxu0 0.0
        %1079 = vmatpush1.msra.mxu0 0.0
        %1080 = vmatprep.subr.mxu0 0.0
        %1081 = vmatpush1.msra.mxu0 0.0
        %1082 = vmatprep.subr.mxu0 0.0
        %1083 = vmatpush1.msra.mxu0 0.0
        %1084 = vmatprep.subr.mxu0 0.0
        %1085 = vmatpush1.msra.mxu0 0.0
        %1086 = vmatprep.subr.mxu0 0.0
        %1087 = vmatpush1.msra.mxu0 0.0
        %1088 = vmatprep.subr.mxu0 0.0
        %1089 = vmatpush1.msra.mxu0 0.0
        %1090 = vmatprep.mubr.f32.mxu0 0.0
        %1091 = vmatmul.mubr.f32.gmra.mrb[0].mxu0 %v1018
        %v1092 = vpop.f32.mrb[0].mxu0
        %v1093 = vadd.f32 0.0, %v1092
        %v1094 = vpop.f32.mrb[0].mxu0
        %v1095 = vadd.f32 0.0, %v1094
        %1096 = vdwg.mxu0
        %v1097 = vadd.f32 %v995, %v1093
        %v1098 = vadd.f32 %v996, %v1095
        %v1101 = vcombine.low %v1097, %v1098
        %1103 = vst [vmem:[%s163] sm:$0xff] %v1101
        %s1104 = sand.u32 %s93, 1
        %s1105 = scalar_lea.sflag [#allocation4], %s1104
        %s1106 = sand.u32 %s93, 1
        %s1107 = smul.addr %s1106, 8
        %s1108 = scalar_lea.vmem [#allocation3], %s1107
        // Predicated region
        $region33: #{tpu_custom_call.1} parent=31 // pred_check
          %p1109 = pneg %p103
        $region34: #{tpu_custom_call.1} parent=31 // pred_check_branch
          %1111 = sbr.rel (%p1109) target = $region36
        $region35: #{tpu_custom_call.1} parent=31 // pred_region
          %s1113 = ssub.s32 128, 128
          %1114 = vsyncadd %s1105, %s1113
          %s1115 = smul.addr %s17, 2
          %s1116 = smul.addr %s1115, 64
          %s1117 = scalar_lea.hbm %s3, %s1116
          %s1119 = sshll.u32 %s1108, 4
          %s1120 = int_to_ptr.vmem [resolvable:$true] %s1119
          %1122 = dma.vmem_to_hbm [thread:$0]  %s1120, 128, %s1117, %s1105
        $region36: #{tpu_custom_call.1} parent=31 // pred_fallthru
          _
      $region32: #{tpu_custom_call.1} parent=5 // pred_fallthru
        _
      %p1123 = scmp.le.s32.totalorder 2, %s12
      // Predicated region
      $region37: #{tpu_custom_call.1} parent=5 // pred_check
        %p1124 = pneg %p1123
      $region38: #{tpu_custom_call.1} parent=5 // pred_check_branch
        %1126 = sbr.rel (%p1124) target = $region40
      $region39: #{tpu_custom_call.1} parent=5 // pred_region
        %s1127 = ssub.s32 %s12, 2
        // Predicated region
        $region41: #{tpu_custom_call.1} parent=39 // pred_check
          %p1128 = pneg %p109
        $region42: #{tpu_custom_call.1} parent=39 // pred_check_branch
          %1130 = sbr.rel (%p1128) target = $region44
        $region43: #{tpu_custom_call.1} parent=39 // pred_region
          %s1131 = sand.u32 %s94, 1
          %s1132 = scalar_lea.sflag [#allocation4], %s1131
          %s1133 = sand.u32 %s94, 1
          %s1134 = smul.addr %s1133, 8
          %s1135 = scalar_lea.vmem [#allocation3], %s1134
          %1136 = dma.done %s1132, 128
        $region44: #{tpu_custom_call.1} parent=39 // pred_fallthru
          _
      $region40: #{tpu_custom_call.1} parent=5 // pred_fallthru
        _
    $region6: #{tpu_custom_call.1} parent=1 // loop_footer
      %s16 = sadd.s32 1, %s12
    $region7: #{tpu_custom_call.1} parent=1 // loop_footer_branch
      %11 = sbr.rel target = $region3
    $region8: #{tpu_custom_call.1} parent=1 // loop_exit
      _
    %1137 = vsyncpa [#allocation4], 1
    %s1138 = scalar_lea.sflag [#allocation4], 1
    %1139 = vsyncpa %s1138, 1

</llo_original>
